<compile_context>
chip_gen: v7x
topology: tpu7x:2x2x1
jax: 0.10.0
libtpu: 0.0.40
codegen_flags: <defaults>
</compile_context>

<pallas_src>
import functools

import jax
import jax.numpy as jnp
from jax.experimental import pallas as pl
from jax.experimental.pallas import tpu as pltpu


def relation_net_kernel(x_ref, w1_ref, b1_ref, w2_ref, b2_ref, w3_ref, b3_ref, o_ref):
    # fc1 (bf16 inputs, f32 accumulation) + bias + ReLU
    h1 = jnp.dot(x_ref[...], w1_ref[...], preferred_element_type=jnp.float32)
    h1 = jnp.maximum(h1 + b1_ref[...], 0.0)
    # fc2 (bf16 inputs, f32 accumulation) + bias + ReLU
    h2 = jnp.dot(h1.astype(w2_ref.dtype), w2_ref[...],
                 preferred_element_type=jnp.float32)
    h2 = jnp.maximum(h2 + b2_ref[...], 0.0)
    # fc3: 256 -> 1.  A 1-column matmul wastes the MXU and forces masked
    # single-lane stores; do it on the VPU/XLU (multiply + lane reduction).
    h3 = jnp.sum(h2 * w3_ref[...], axis=-1, keepdims=True) + b3_ref[...]
    o_ref[...] = jax.nn.sigmoid(h3).astype(o_ref.dtype)


def _round_up(a, b):
    return (a + b - 1) // b * b


def relation_network(x, params, *, tile_m=512):
    """x: (N, 2*input_dim) float32 -> (N, 1) float32."""
    w1, b1, w2, b2, w3, b3 = params
    N, d_in = x.shape
    h1_dim = w1.shape[1]    # 1024
    h2_dim = w2.shape[1]    # 256
    d_out = w3.shape[1]     # 1

    # Zero-pad the feature dim to a full 128-lane multiple (zeros in the extra
    # x columns / w1 rows leave x @ w1 unchanged).
    d_in_p = _round_up(d_in, 128)
    if d_in_p != d_in:
        x = jnp.pad(x, ((0, 0), (0, d_in_p - d_in)))
        w1 = jnp.pad(w1, ((0, d_in_p - d_in), (0, 0)))

    # Effective batch tile: large for throughput, but never bigger than the
    # (8-row aligned) batch so tiny inputs don't pad to 512 rows.
    tile_m_eff = max(8, min(tile_m, _round_up(N, 8)))
    n_pad = _round_up(N, tile_m_eff)
    if n_pad != N:
        x = jnp.pad(x, ((0, n_pad - N), (0, 0)))

    # bf16 MXU inputs, f32 accumulation.  Biases and the tiny fc3 stay f32.
    x_bf = x.astype(jnp.bfloat16)
    w1_bf = w1.astype(jnp.bfloat16)
    w2_bf = w2.astype(jnp.bfloat16)
    w3_row = w3.T.astype(jnp.float32)          # (1, 256)

    grid = (n_pad // tile_m_eff,)
    full = lambda shape: pl.BlockSpec(shape, lambda i: (0, 0))  # broadcast block

    cost = pl.CostEstimate(
        flops=2 * n_pad * (d_in_p * h1_dim + h1_dim * h2_dim + h2_dim * d_out),
        transcendentals=n_pad * d_out,
        bytes_accessed=(n_pad * d_in_p * 2                       # x (bf16)
                        + (d_in_p * h1_dim + h1_dim * h2_dim) * 2  # w1, w2 (bf16)
                        + (h1_dim + h2_dim + h2_dim * d_out + d_out) * 4  # biases, w3
                        + n_pad * d_out * 4),                    # output
    )

    out = pl.pallas_call(
        relation_net_kernel,
        out_shape=jax.ShapeDtypeStruct((n_pad, d_out), jnp.float32),
        grid_spec=pltpu.PrefetchScalarGridSpec(
            num_scalar_prefetch=0,
            grid=grid,
            in_specs=[
                pl.BlockSpec((tile_m_eff, d_in_p), lambda i: (i, 0)),  # x tile
                full((d_in_p, h1_dim)),     # w1
                full((1, h1_dim)),          # b1
                full((h1_dim, h2_dim)),     # w2
                full((1, h2_dim)),          # b2
                full((1, h2_dim)),          # w3 as a lane-dense row
                full((1, d_out)),           # b3
            ],
            out_specs=pl.BlockSpec((tile_m_eff, d_out), lambda i: (i, 0)),
        ),
        compiler_params=pltpu.CompilerParams(
            dimension_semantics=("parallel",),   # >=2 grid steps shard across v7x TCs
        ),
        cost_estimate=cost,
    )(x_bf, w1_bf, b1, w2_bf, b2, w3_row, b3)

    return out[:N]


def init_params(key, input_dim):
    """Deterministic init matching nn.Linear shapes (stored transposed)."""
    d_in = 2 * input_dim
    dims = [(d_in, 1024), (1024, 256), (256, 1)]
    params = []
    for fan_in, fan_out in dims:
        key, kw, kb = jax.random.split(key, 3)
        bound = 1.0 / jnp.sqrt(fan_in)
        w = jax.random.uniform(kw, (fan_in, fan_out), jnp.float32, -bound, bound)
        b = jax.random.uniform(kb, (1, fan_out), jnp.float32, -bound, bound)
        params += [w, b]
    return tuple(params)


def relation_network_ref(x, params, *, bf16_inputs=True):
    """Pure-JAX reference.  bf16_inputs mirrors the kernel's MXU input dtype."""
    w1, b1, w2, b2, w3, b3 = params
    if bf16_inputs:
        xm, w1m, w2m = (a.astype(jnp.bfloat16) for a in (x, w1, w2))
    else:
        xm, w1m, w2m = x, w1, w2
    h = jnp.maximum(jnp.dot(xm, w1m, preferred_element_type=jnp.float32) + b1, 0.0)
    h = jnp.maximum(
        jnp.dot(h.astype(w2m.dtype), w2m, preferred_element_type=jnp.float32) + b2, 0.0)
    return jax.nn.sigmoid(h @ w3 + b3)


if __name__ == "__main__":
    # NOTE: the PyTorch forward does `print(x.size())`; omitted to keep output clean.
    input_dim = 32            # fc1 expects 2*input_dim features
    key = jax.random.PRNGKey(0)
    kx, kp, kx2 = jax.random.split(key, 3)
    params = init_params(kp, input_dim)

    # Small, single-tile case.
    x = jax.random.normal(kx, (8, 2 * input_dim), jnp.float32)
    out = jax.block_until_ready(relation_network(x, params))
    assert out.shape == (8, 1)
    assert jnp.allclose(out, relation_network_ref(x, params), atol=2e-4, rtol=2e-4)
    assert jnp.allclose(out, relation_network_ref(x, params, bf16_inputs=False),
                        atol=3e-2, rtol=3e-2)

    # Multi-step grid + ragged-batch padding path.
    x2 = jax.random.normal(kx2, (200, 2 * input_dim), jnp.float32)
    out2 = jax.block_until_ready(relation_network(x2, params, tile_m=128))
    assert out2.shape == (200, 1)
    assert jnp.allclose(out2, relation_network_ref(x2, params), atol=2e-4, rtol=2e-4)

    print("KERNEL_OK")
</pallas_src>

<mosaic_0001>
module attributes {stable_mosaic.version = 11 : i64} {
  func.func @relation_net_kernel(%arg0: i32, %arg1: memref<8x128xbf16, #tpu.memory_space<vmem>>, %arg2: memref<128x1024xbf16, #tpu.memory_space<vmem>>, %arg3: memref<1x1024xf32, #tpu.memory_space<vmem>>, %arg4: memref<1024x256xbf16, #tpu.memory_space<vmem>>, %arg5: memref<1x256xf32, #tpu.memory_space<vmem>>, %arg6: memref<1x256xf32, #tpu.memory_space<vmem>>, %arg7: memref<1x1xf32, #tpu.memory_space<vmem>>, %arg8: memref<8x1xf32, #tpu.memory_space<vmem>>) attributes {dimension_semantics = [#tpu.dimension_semantics<parallel>], iteration_bounds = array<i64: 1>, scalar_prefetch = 0 : i64, scratch_operands = 0 : i64, tpu.core_type = #tpu.core_type<tc>, window_params = [{transform_indices = @transform_0, window_bounds = array<i64: 8, 128>}, {pipeline_mode = #tpu.pipeline_mode<synchronous>, transform_indices = @transform_1, window_bounds = array<i64: 128, 1024>}, {pipeline_mode = #tpu.pipeline_mode<synchronous>, transform_indices = @transform_2, window_bounds = array<i64: 1, 1024>}, {pipeline_mode = #tpu.pipeline_mode<synchronous>, transform_indices = @transform_3, window_bounds = array<i64: 1024, 256>}, {pipeline_mode = #tpu.pipeline_mode<synchronous>, transform_indices = @transform_4, window_bounds = array<i64: 1, 256>}, {pipeline_mode = #tpu.pipeline_mode<synchronous>, transform_indices = @transform_5, window_bounds = array<i64: 1, 256>}, {pipeline_mode = #tpu.pipeline_mode<synchronous>, transform_indices = @transform_6, window_bounds = array<i64: 1, 1>}, {transform_indices = @transform_7, window_bounds = array<i64: 8, 1>}]} {
    %c0 = arith.constant 0 : index
    %c0_0 = arith.constant 0 : index
    %0 = vector.load %arg1[%c0, %c0_0] : memref<8x128xbf16, #tpu.memory_space<vmem>>, vector<8x128xbf16>
    %c0_1 = arith.constant 0 : index
    %c0_2 = arith.constant 0 : index
    %1 = vector.load %arg2[%c0_1, %c0_2] : memref<128x1024xbf16, #tpu.memory_space<vmem>>, vector<128x1024xbf16>
    %cst = arith.constant dense<0.000000e+00> : vector<8x1024xf32>
    %2 = tpu.matmul %0, %1, %cst {dimension_numbers = #tpu.dot_dimension_numbers<[1], [0], [0], [1], [0, 0, 1, 1], [], []>} : vector<8x128xbf16>, vector<128x1024xbf16>, vector<8x1024xf32> -> vector<8x1024xf32>
    %c0_3 = arith.constant 0 : index
    %c0_4 = arith.constant 0 : index
    %3 = vector.load %arg3[%c0_3, %c0_4] : memref<1x1024xf32, #tpu.memory_space<vmem>>, vector<1x1024xf32>
    %4 = vector.broadcast %3 : vector<1x1024xf32> to vector<8x1024xf32>
    %5 = arith.addf %2, %4 : vector<8x1024xf32>
    %cst_5 = arith.constant 0.000000e+00 : f32
    %6 = vector.broadcast %cst_5 : f32 to vector<8x1024xf32>
    %7 = arith.maximumf %5, %6 : vector<8x1024xf32>
    %8 = arith.truncf %7 : vector<8x1024xf32> to vector<8x1024xbf16>
    %c0_6 = arith.constant 0 : index
    %c0_7 = arith.constant 0 : index
    %9 = vector.load %arg4[%c0_6, %c0_7] : memref<1024x256xbf16, #tpu.memory_space<vmem>>, vector<1024x256xbf16>
    %cst_8 = arith.constant dense<0.000000e+00> : vector<8x256xf32>
    %10 = tpu.matmul %8, %9, %cst_8 {dimension_numbers = #tpu.dot_dimension_numbers<[1], [0], [0], [1], [0, 0, 1, 1], [], []>} : vector<8x1024xbf16>, vector<1024x256xbf16>, vector<8x256xf32> -> vector<8x256xf32>
    %c0_9 = arith.constant 0 : index
    %c0_10 = arith.constant 0 : index
    %11 = vector.load %arg5[%c0_9, %c0_10] : memref<1x256xf32, #tpu.memory_space<vmem>>, vector<1x256xf32>
    %12 = vector.broadcast %11 : vector<1x256xf32> to vector<8x256xf32>
    %13 = arith.addf %10, %12 : vector<8x256xf32>
    %cst_11 = arith.constant 0.000000e+00 : f32
    %14 = vector.broadcast %cst_11 : f32 to vector<8x256xf32>
    %15 = arith.maximumf %13, %14 : vector<8x256xf32>
    %c0_12 = arith.constant 0 : index
    %c0_13 = arith.constant 0 : index
    %16 = vector.load %arg6[%c0_12, %c0_13] : memref<1x256xf32, #tpu.memory_space<vmem>>, vector<1x256xf32>
    %17 = vector.broadcast %16 : vector<1x256xf32> to vector<8x256xf32>
    %18 = arith.mulf %15, %17 : vector<8x256xf32>
    %cst_14 = arith.constant dense<0.000000e+00> : vector<8xf32>
    %19 = vector.multi_reduction <add>, %18, %cst_14 [1] : vector<8x256xf32> to vector<8xf32>
    %20 = vector.shape_cast %19 : vector<8xf32> to vector<8x1xf32>
    %c0_15 = arith.constant 0 : index
    %c0_16 = arith.constant 0 : index
    %21 = vector.load %arg7[%c0_15, %c0_16] : memref<1x1xf32, #tpu.memory_space<vmem>>, vector<1x1xf32>
    %22 = vector.broadcast %21 : vector<1x1xf32> to vector<8x1xf32>
    %23 = arith.addf %20, %22 : vector<8x1xf32>
    %24 = arith.negf %23 : vector<8x1xf32>
    %25 = math.exp %24 : vector<8x1xf32>
    %cst_17 = arith.constant 1.000000e+00 : f32
    %26 = vector.broadcast %cst_17 : f32 to vector<8x1xf32>
    %27 = arith.addf %26, %25 : vector<8x1xf32>
    %28 = arith.divf %26, %27 : vector<8x1xf32>
    %c0_18 = arith.constant 0 : index
    %c0_19 = arith.constant 0 : index
    %29 = vector.load %arg8[%c0_18, %c0_19] : memref<8x1xf32, #tpu.memory_space<vmem>>, vector<8x1xf32>
    tpu.vector_store %arg8[%c0_18, %c0_19], %28 {strides = array<i32>} : memref<8x1xf32, #tpu.memory_space<vmem>>, vector<8x1xf32>,
    return
  }
  func.func @transform_0(%arg0: i32) -> (i32, i32) {
    %c0_i32 = arith.constant 0 : i32
    %c0_i32_0 = arith.constant 0 : i32
    return %arg0, %c0_i32 : i32, i32
  }
  func.func @transform_1(%arg0: i32) -> (i32, i32) {
    %c0_i32 = arith.constant 0 : i32
    %c0_i32_0 = arith.constant 0 : i32
    %c0_i32_1 = arith.constant 0 : i32
    return %c0_i32, %c0_i32_0 : i32, i32
  }
  func.func @transform_2(%arg0: i32) -> (i32, i32) {
    %c0_i32 = arith.constant 0 : i32
    %c0_i32_0 = arith.constant 0 : i32
    %c0_i32_1 = arith.constant 0 : i32
    return %c0_i32, %c0_i32_0 : i32, i32
  }
  func.func @transform_3(%arg0: i32) -> (i32, i32) {
    %c0_i32 = arith.constant 0 : i32
    %c0_i32_0 = arith.constant 0 : i32
    %c0_i32_1 = arith.constant 0 : i32
    return %c0_i32, %c0_i32_0 : i32, i32
  }
  func.func @transform_4(%arg0: i32) -> (i32, i32) {
    %c0_i32 = arith.constant 0 : i32
    %c0_i32_0 = arith.constant 0 : i32
    %c0_i32_1 = arith.constant 0 : i32
    return %c0_i32, %c0_i32_0 : i32, i32
  }
  func.func @transform_5(%arg0: i32) -> (i32, i32) {
    %c0_i32 = arith.constant 0 : i32
    %c0_i32_0 = arith.constant 0 : i32
    %c0_i32_1 = arith.constant 0 : i32
    return %c0_i32, %c0_i32_0 : i32, i32
  }
  func.func @transform_6(%arg0: i32) -> (i32, i32) {
    %c0_i32 = arith.constant 0 : i32
    %c0_i32_0 = arith.constant 0 : i32
    %c0_i32_1 = arith.constant 0 : i32
    return %c0_i32, %c0_i32_0 : i32, i32
  }
  func.func @transform_7(%arg0: i32) -> (i32, i32) {
    %c0_i32 = arith.constant 0 : i32
    %c0_i32_0 = arith.constant 0 : i32
    return %arg0, %c0_i32 : i32, i32
  }
}

</mosaic_0001>

<llo_original>
// kernel: tpu_custom_call.1
$region0: #{tpu_custom_call.1}
  #allocation0 [shape = 'u32[]', space=smem, size = 0x4, offset = 0x4, fixed_abs, tag = 'smem constant byte address 0x4 - core index']
  #allocation1 [shape = 'u32[144,128]{1,0:T(1,128)}', space=vmem, size = 0x12000, scoped, tag = 'internal scratch']
  #allocation2 [shape = 'f32[1,1]{1,0:T(1,128)S(1)}', space=vmem, size = 0x200, scoped, tag = 'scoped memory for tpu_custom_call.1']
  %s0 = inlined_call_operand.hbm [shape: bf16[8,128], index: 0, kind: input, shape index: {}]
  %s1 = inlined_call_operand.hbm [shape: bf16[128,1024], index: 1, kind: input, shape index: {}]
  %s2 = inlined_call_operand.vmem [shape: f32[1,1024], index: 2, kind: input, shape index: {}]
  %s3 = inlined_call_operand.hbm [shape: bf16[1024,256], index: 3, kind: input, shape index: {}]
  %s4 = inlined_call_operand.vmem [shape: f32[1,256], index: 4, kind: input, shape index: {}]
  %s5 = inlined_call_operand.vmem [shape: f32[1,256], index: 5, kind: input, shape index: {}]
  %s6 = inlined_call_operand.<no memory space> [shape: f32[1,1], index: 6, kind: input, shape index: {}]
  %s7 = inlined_call_operand.vmem [shape: f32[8,1], index: 7, kind: output, shape index: {}]
  %s8 = sld [smem:[#allocation0]]
  $region50: #{tpu_custom_call.1} parent=0
    _
  %s10 = ssub.s32 1, %s8
  %s11 = scalar_select 0, %s10, %s8
  %v12 = vstv %s6
  %13 = vst [vmem:[#allocation2] sm:$0x1] %v12
  $region1: #{tpu_custom_call.1} parent=0
    #allocation3 [shape = 'u8[2048]{0}', space=vmem, size = 0x800, scoped, tag = 'input window, operand 0, single buffered']
    #allocation4 [shape = 's32[1]{0}', space=sflag, size = 0x4, scoped, tag = 'scoped memory for tpu_custom_call.1']
    #allocation5 [shape = 'u8[262144]{0}', space=vmem, size = 0x40000, scoped, tag = 'input window, operand 1, single buffered']
    #allocation6 [shape = 's32[1]{0}', space=sflag, size = 0x4, scoped, tag = 'scoped memory for tpu_custom_call.1']
    #allocation7 [shape = 'u8[524288]{0}', space=vmem, size = 0x80000, scoped, tag = 'input window, operand 3, single buffered']
    %14 = vsyncpa [#allocation4], 0
    %15 = vsyncpa [#allocation6], 0
    // Predicated region
    $region2: #{tpu_custom_call.1} parent=1 // pred_check
      _
    $region3: #{tpu_custom_call.1} parent=1 // pred_check_branch
      %17 = sbr.rel (0) target = $region5
    $region4: #{tpu_custom_call.1} parent=1 // pred_region
      %s19 = ssub.s32 64, 64
      %20 = vsyncadd [#allocation4], %s19
      %s22 = sshll.u32 [#allocation3], 4
      %s23 = int_to_ptr.vmem [resolvable:$true] %s22
      %25 = dma.hbm_to_vmem [thread:$0]  %s0, 64, %s23, [#allocation4]
    $region5: #{tpu_custom_call.1} parent=1 // pred_fallthru
      _
    // Predicated region
    $region6: #{tpu_custom_call.1} parent=1 // pred_check
      _
    $region7: #{tpu_custom_call.1} parent=1 // pred_check_branch
      %27 = sbr.rel (0) target = $region9
    $region8: #{tpu_custom_call.1} parent=1 // pred_region
      %s29 = ssub.s32 8192, 8192
      %30 = vsyncadd [#allocation6], %s29
      %s31 = sshll.u32 [#allocation5], 4
      %s32 = int_to_ptr.vmem [resolvable:$true] %s31
      %37 = dma.hbm_to_vmem [thread:$0]  %s1, 8192, %s32, [#allocation6], 512, 512, 32
    $region9: #{tpu_custom_call.1} parent=1 // pred_fallthru
      _
    // Predicated region
    $region10: #{tpu_custom_call.1} parent=1 // pred_check
      _
    $region11: #{tpu_custom_call.1} parent=1 // pred_check_branch
      %39 = sbr.rel (0) target = $region13
    $region12: #{tpu_custom_call.1} parent=1 // pred_region
      _
    $region13: #{tpu_custom_call.1} parent=1 // pred_fallthru
      _
    // Predicated region
    $region14: #{tpu_custom_call.1} parent=1 // pred_check
      _
    $region15: #{tpu_custom_call.1} parent=1 // pred_check_branch
      %41 = sbr.rel (0) target = $region17
    $region16: #{tpu_custom_call.1} parent=1 // pred_region
      %s43 = ssub.s32 16384, 16384
      %44 = vsyncadd [#allocation6], %s43
      %s45 = sshll.u32 [#allocation7], 4
      %s46 = int_to_ptr.vmem [resolvable:$true] %s45
      %51 = dma.hbm_to_vmem [thread:$0]  %s3, 16384, %s46, [#allocation6], 128, 128, 8
    $region17: #{tpu_custom_call.1} parent=1 // pred_fallthru
      _
    // Predicated region
    $region18: #{tpu_custom_call.1} parent=1 // pred_check
      _
    $region19: #{tpu_custom_call.1} parent=1 // pred_check_branch
      %53 = sbr.rel (0) target = $region21
    $region20: #{tpu_custom_call.1} parent=1 // pred_region
      _
    $region21: #{tpu_custom_call.1} parent=1 // pred_fallthru
      _
    // Predicated region
    $region22: #{tpu_custom_call.1} parent=1 // pred_check
      _
    $region23: #{tpu_custom_call.1} parent=1 // pred_check_branch
      %55 = sbr.rel (0) target = $region25
    $region24: #{tpu_custom_call.1} parent=1 // pred_region
      _
    $region25: #{tpu_custom_call.1} parent=1 // pred_fallthru
      _
    // Predicated region
    $region26: #{tpu_custom_call.1} parent=1 // pred_check
      _
    $region27: #{tpu_custom_call.1} parent=1 // pred_check_branch
      %57 = sbr.rel (0) target = $region29
    $region28: #{tpu_custom_call.1} parent=1 // pred_region
      _
    $region29: #{tpu_custom_call.1} parent=1 // pred_fallthru
      _
    // Predicated region
    $region30: #{tpu_custom_call.1} parent=1 // pred_check
      _
    $region31: #{tpu_custom_call.1} parent=1 // pred_check_branch
      %59 = sbr.rel (0) target = $region33
    $region32: #{tpu_custom_call.1} parent=1 // pred_region
      %60 = dma.done [#allocation4], 64
    $region33: #{tpu_custom_call.1} parent=1 // pred_fallthru
      _
    // Predicated region
    $region34: #{tpu_custom_call.1} parent=1 // pred_check
      _
    $region35: #{tpu_custom_call.1} parent=1 // pred_check_branch
      %62 = sbr.rel (0) target = $region37
    $region36: #{tpu_custom_call.1} parent=1 // pred_region
      %63 = dma.done [#allocation6], 8192
    $region37: #{tpu_custom_call.1} parent=1 // pred_fallthru
      _
    // Predicated region
    $region38: #{tpu_custom_call.1} parent=1 // pred_check
      _
    $region39: #{tpu_custom_call.1} parent=1 // pred_check_branch
      %65 = sbr.rel (0) target = $region41
    $region40: #{tpu_custom_call.1} parent=1 // pred_region
      %66 = dma.done [#allocation6], 16384
    $region41: #{tpu_custom_call.1} parent=1 // pred_fallthru
      _
    %v68 = vld [vmem:[#allocation3] sm:$0xf]
    %v69 = vld [vmem:[#allocation5] sm:$0xff]
    %v70 = vld [vmem:[#allocation5 + $0x8] sm:$0xff]
    %v71 = vld [vmem:[#allocation5 + $0x10] sm:$0xff]
    %v72 = vld [vmem:[#allocation5 + $0x18] sm:$0xff]
    %v73 = vld [vmem:[#allocation5 + $0x20] sm:$0xff]
    %v74 = vld [vmem:[#allocation5 + $0x28] sm:$0xff]
    %v75 = vld [vmem:[#allocation5 + $0x30] sm:$0xff]
    %v76 = vld [vmem:[#allocation5 + $0x38] sm:$0xff]
    %v77 = vld [vmem:[#allocation5 + $0x40] sm:$0xff]
    %v78 = vld [vmem:[#allocation5 + $0x48] sm:$0xff]
    %v79 = vld [vmem:[#allocation5 + $0x50] sm:$0xff]
    %v80 = vld [vmem:[#allocation5 + $0x58] sm:$0xff]
    %v81 = vld [vmem:[#allocation5 + $0x60] sm:$0xff]
    %v82 = vld [vmem:[#allocation5 + $0x68] sm:$0xff]
    %v83 = vld [vmem:[#allocation5 + $0x70] sm:$0xff]
    %v84 = vld [vmem:[#allocation5 + $0x78] sm:$0xff]
    %v85 = vld [vmem:[#allocation5 + $0x80] sm:$0xff]
    %v86 = vld [vmem:[#allocation5 + $0x88] sm:$0xff]
    %v87 = vld [vmem:[#allocation5 + $0x90] sm:$0xff]
    %v88 = vld [vmem:[#allocation5 + $0x98] sm:$0xff]
    %v89 = vld [vmem:[#allocation5 + $0xa0] sm:$0xff]
    %v90 = vld [vmem:[#allocation5 + $0xa8] sm:$0xff]
    %v91 = vld [vmem:[#allocation5 + $0xb0] sm:$0xff]
    %v92 = vld [vmem:[#allocation5 + $0xb8] sm:$0xff]
    %v93 = vld [vmem:[#allocation5 + $0xc0] sm:$0xff]
    %v94 = vld [vmem:[#allocation5 + $0xc8] sm:$0xff]
    %v95 = vld [vmem:[#allocation5 + $0xd0] sm:$0xff]
    %v96 = vld [vmem:[#allocation5 + $0xd8] sm:$0xff]
    %v97 = vld [vmem:[#allocation5 + $0xe0] sm:$0xff]
    %v98 = vld [vmem:[#allocation5 + $0xe8] sm:$0xff]
    %v99 = vld [vmem:[#allocation5 + $0xf0] sm:$0xff]
    %v100 = vld [vmem:[#allocation5 + $0xf8] sm:$0xff]
    %v101 = vld [vmem:[#allocation5 + $0x100] sm:$0xff]
    %v102 = vld [vmem:[#allocation5 + $0x108] sm:$0xff]
    %v103 = vld [vmem:[#allocation5 + $0x110] sm:$0xff]
    %v104 = vld [vmem:[#allocation5 + $0x118] sm:$0xff]
    %v105 = vld [vmem:[#allocation5 + $0x120] sm:$0xff]
    %v106 = vld [vmem:[#allocation5 + $0x128] sm:$0xff]
    %v107 = vld [vmem:[#allocation5 + $0x130] sm:$0xff]
    %v108 = vld [vmem:[#allocation5 + $0x138] sm:$0xff]
    %v109 = vld [vmem:[#allocation5 + $0x140] sm:$0xff]
    %v110 = vld [vmem:[#allocation5 + $0x148] sm:$0xff]
    %v111 = vld [vmem:[#allocation5 + $0x150] sm:$0xff]
    %v112 = vld [vmem:[#allocation5 + $0x158] sm:$0xff]
    %v113 = vld [vmem:[#allocation5 + $0x160] sm:$0xff]
    %v114 = vld [vmem:[#allocation5 + $0x168] sm:$0xff]
    %v115 = vld [vmem:[#allocation5 + $0x170] sm:$0xff]
    %v116 = vld [vmem:[#allocation5 + $0x178] sm:$0xff]
    %v117 = vld [vmem:[#allocation5 + $0x180] sm:$0xff]
    %v118 = vld [vmem:[#allocation5 + $0x188] sm:$0xff]
    %v119 = vld [vmem:[#allocation5 + $0x190] sm:$0xff]
    %v120 = vld [vmem:[#allocation5 + $0x198] sm:$0xff]
    %v121 = vld [vmem:[#allocation5 + $0x1a0] sm:$0xff]
    %v122 = vld [vmem:[#allocation5 + $0x1a8] sm:$0xff]
    %v123 = vld [vmem:[#allocation5 + $0x1b0] sm:$0xff]
    %v124 = vld [vmem:[#allocation5 + $0x1b8] sm:$0xff]
    %v125 = vld [vmem:[#allocation5 + $0x1c0] sm:$0xff]
    %v126 = vld [vmem:[#allocation5 + $0x1c8] sm:$0xff]
    %v127 = vld [vmem:[#allocation5 + $0x1d0] sm:$0xff]
    %v128 = vld [vmem:[#allocation5 + $0x1d8] sm:$0xff]
    %v129 = vld [vmem:[#allocation5 + $0x1e0] sm:$0xff]
    %v130 = vld [vmem:[#allocation5 + $0x1e8] sm:$0xff]
    %v131 = vld [vmem:[#allocation5 + $0x1f0] sm:$0xff]
    %v132 = vld [vmem:[#allocation5 + $0x1f8] sm:$0xff]
    %v133 = vld [vmem:[%s2] sm:$0xff]
    %v135 = vlaneseq
    %v136 = vshrl.u32 %v135, 7
    %v137 = vsub.s32 0, %v136
    %v138 = vrot.slane %v133, %v137
    %v139 = vlaneseq
    %v140 = vshrl.u32 %v139, 7
    %v141 = vsub.s32 1, %v140
    %v142 = vrot.slane %v133, %v141
    %v143 = vlaneseq
    %v144 = vshrl.u32 %v143, 7
    %v145 = vsub.s32 2, %v144
    %v146 = vrot.slane %v133, %v145
    %v147 = vlaneseq
    %v148 = vshrl.u32 %v147, 7
    %v149 = vsub.s32 3, %v148
    %v150 = vrot.slane %v133, %v149
    %v151 = vlaneseq
    %v152 = vshrl.u32 %v151, 7
    %v153 = vsub.s32 4, %v152
    %v154 = vrot.slane %v133, %v153
    %v155 = vlaneseq
    %v156 = vshrl.u32 %v155, 7
    %v157 = vsub.s32 5, %v156
    %v158 = vrot.slane %v133, %v157
    %v159 = vlaneseq
    %v160 = vshrl.u32 %v159, 7
    %v161 = vsub.s32 6, %v160
    %v162 = vrot.slane %v133, %v161
    %v163 = vlaneseq
    %v164 = vshrl.u32 %v163, 7
    %v165 = vsub.s32 7, %v164
    %v166 = vrot.slane %v133, %v165
    %v239 = vunpack.c.l.b16 %v69
    %v240 = vunpack.c.h.b16 %v69
    %v241 = vunpack.c.l.b16 %v70
    %v242 = vunpack.c.h.b16 %v70
    %v243 = vunpack.c.l.b16 %v71
    %v244 = vunpack.c.h.b16 %v71
    %v245 = vunpack.c.l.b16 %v72
    %v246 = vunpack.c.h.b16 %v72
    %v247 = vunpack.c.l.b16 %v73
    %v248 = vunpack.c.h.b16 %v73
    %v249 = vunpack.c.l.b16 %v74
    %v250 = vunpack.c.h.b16 %v74
    %v251 = vunpack.c.l.b16 %v75
    %v252 = vunpack.c.h.b16 %v75
    %v253 = vunpack.c.l.b16 %v76
    %v254 = vunpack.c.h.b16 %v76
    %v255 = vunpack.c.l.b16 %v77
    %v256 = vunpack.c.h.b16 %v77
    %v257 = vunpack.c.l.b16 %v78
    %v258 = vunpack.c.h.b16 %v78
    %v259 = vunpack.c.l.b16 %v79
    %v260 = vunpack.c.h.b16 %v79
    %v261 = vunpack.c.l.b16 %v80
    %v262 = vunpack.c.h.b16 %v80
    %v263 = vunpack.c.l.b16 %v81
    %v264 = vunpack.c.h.b16 %v81
    %v265 = vunpack.c.l.b16 %v82
    %v266 = vunpack.c.h.b16 %v82
    %v267 = vunpack.c.l.b16 %v83
    %v268 = vunpack.c.h.b16 %v83
    %v269 = vunpack.c.l.b16 %v84
    %v270 = vunpack.c.h.b16 %v84
    %v271 = vunpack.c.l.b16 %v85
    %v272 = vunpack.c.h.b16 %v85
    %v273 = vunpack.c.l.b16 %v86
    %v274 = vunpack.c.h.b16 %v86
    %v275 = vunpack.c.l.b16 %v87
    %v276 = vunpack.c.h.b16 %v87
    %v277 = vunpack.c.l.b16 %v88
    %v278 = vunpack.c.h.b16 %v88
    %v279 = vunpack.c.l.b16 %v89
    %v280 = vunpack.c.h.b16 %v89
    %v281 = vunpack.c.l.b16 %v90
    %v282 = vunpack.c.h.b16 %v90
    %v283 = vunpack.c.l.b16 %v91
    %v284 = vunpack.c.h.b16 %v91
    %v285 = vunpack.c.l.b16 %v92
    %v286 = vunpack.c.h.b16 %v92
    %v287 = vunpack.c.l.b16 %v93
    %v288 = vunpack.c.h.b16 %v93
    %v289 = vunpack.c.l.b16 %v94
    %v290 = vunpack.c.h.b16 %v94
    %v291 = vunpack.c.l.b16 %v95
    %v292 = vunpack.c.h.b16 %v95
    %v293 = vunpack.c.l.b16 %v96
    %v294 = vunpack.c.h.b16 %v96
    %v295 = vunpack.c.l.b16 %v97
    %v296 = vunpack.c.h.b16 %v97
    %v297 = vunpack.c.l.b16 %v98
    %v298 = vunpack.c.h.b16 %v98
    %v299 = vunpack.c.l.b16 %v99
    %v300 = vunpack.c.h.b16 %v99
    %v301 = vunpack.c.l.b16 %v100
    %v302 = vunpack.c.h.b16 %v100
    %v303 = vunpack.c.l.b16 %v101
    %v304 = vunpack.c.h.b16 %v101
    %v305 = vunpack.c.l.b16 %v102
    %v306 = vunpack.c.h.b16 %v102
    %v307 = vunpack.c.l.b16 %v103
    %v308 = vunpack.c.h.b16 %v103
    %v309 = vunpack.c.l.b16 %v104
    %v310 = vunpack.c.h.b16 %v104
    %v311 = vunpack.c.l.b16 %v105
    %v312 = vunpack.c.h.b16 %v105
    %v313 = vunpack.c.l.b16 %v106
    %v314 = vunpack.c.h.b16 %v106
    %v315 = vunpack.c.l.b16 %v107
    %v316 = vunpack.c.h.b16 %v107
    %v317 = vunpack.c.l.b16 %v108
    %v318 = vunpack.c.h.b16 %v108
    %v319 = vunpack.c.l.b16 %v109
    %v320 = vunpack.c.h.b16 %v109
    %v321 = vunpack.c.l.b16 %v110
    %v322 = vunpack.c.h.b16 %v110
    %v323 = vunpack.c.l.b16 %v111
    %v324 = vunpack.c.h.b16 %v111
    %v325 = vunpack.c.l.b16 %v112
    %v326 = vunpack.c.h.b16 %v112
    %v327 = vunpack.c.l.b16 %v113
    %v328 = vunpack.c.h.b16 %v113
    %v329 = vunpack.c.l.b16 %v114
    %v330 = vunpack.c.h.b16 %v114
    %v331 = vunpack.c.l.b16 %v115
    %v332 = vunpack.c.h.b16 %v115
    %v333 = vunpack.c.l.b16 %v116
    %v334 = vunpack.c.h.b16 %v116
    %v335 = vunpack.c.l.b16 %v117
    %v336 = vunpack.c.h.b16 %v117
    %v337 = vunpack.c.l.b16 %v118
    %v338 = vunpack.c.h.b16 %v118
    %v339 = vunpack.c.l.b16 %v119
    %v340 = vunpack.c.h.b16 %v119
    %v341 = vunpack.c.l.b16 %v120
    %v342 = vunpack.c.h.b16 %v120
    %v343 = vunpack.c.l.b16 %v121
    %v344 = vunpack.c.h.b16 %v121
    %v345 = vunpack.c.l.b16 %v122
    %v346 = vunpack.c.h.b16 %v122
    %v347 = vunpack.c.l.b16 %v123
    %v348 = vunpack.c.h.b16 %v123
    %v349 = vunpack.c.l.b16 %v124
    %v350 = vunpack.c.h.b16 %v124
    %v351 = vunpack.c.l.b16 %v125
    %v352 = vunpack.c.h.b16 %v125
    %v353 = vunpack.c.l.b16 %v126
    %v354 = vunpack.c.h.b16 %v126
    %v355 = vunpack.c.l.b16 %v127
    %v356 = vunpack.c.h.b16 %v127
    %v357 = vunpack.c.l.b16 %v128
    %v358 = vunpack.c.h.b16 %v128
    %v359 = vunpack.c.l.b16 %v129
    %v360 = vunpack.c.h.b16 %v129
    %v361 = vunpack.c.l.b16 %v130
    %v362 = vunpack.c.h.b16 %v130
    %v363 = vunpack.c.l.b16 %v131
    %v364 = vunpack.c.h.b16 %v131
    %v365 = vunpack.c.l.b16 %v132
    %v366 = vunpack.c.h.b16 %v132
    %v367 = vpack.c.b16 %v247, %v239
    %v368 = vpack.c.b16 %v248, %v240
    %v369 = vpack.c.b16 %v249, %v241
    %v370 = vpack.c.b16 %v250, %v242
    %v371 = vpack.c.b16 %v251, %v243
    %v372 = vpack.c.b16 %v252, %v244
    %v373 = vpack.c.b16 %v253, %v245
    %v374 = vpack.c.b16 %v254, %v246
    %v375 = vpack.c.b16 %v263, %v255
    %v376 = vpack.c.b16 %v264, %v256
    %v377 = vpack.c.b16 %v265, %v257
    %v378 = vpack.c.b16 %v266, %v258
    %v379 = vpack.c.b16 %v267, %v259
    %v380 = vpack.c.b16 %v268, %v260
    %v381 = vpack.c.b16 %v269, %v261
    %v382 = vpack.c.b16 %v270, %v262
    %v383 = vpack.c.b16 %v279, %v271
    %v384 = vpack.c.b16 %v280, %v272
    %v385 = vpack.c.b16 %v281, %v273
    %v386 = vpack.c.b16 %v282, %v274
    %v387 = vpack.c.b16 %v283, %v275
    %v388 = vpack.c.b16 %v284, %v276
    %v389 = vpack.c.b16 %v285, %v277
    %v390 = vpack.c.b16 %v286, %v278
    %v391 = vpack.c.b16 %v295, %v287
    %v392 = vpack.c.b16 %v296, %v288
    %v393 = vpack.c.b16 %v297, %v289
    %v394 = vpack.c.b16 %v298, %v290
    %v395 = vpack.c.b16 %v299, %v291
    %v396 = vpack.c.b16 %v300, %v292
    %v397 = vpack.c.b16 %v301, %v293
    %v398 = vpack.c.b16 %v302, %v294
    %v399 = vpack.c.b16 %v311, %v303
    %v400 = vpack.c.b16 %v312, %v304
    %v401 = vpack.c.b16 %v313, %v305
    %v402 = vpack.c.b16 %v314, %v306
    %v403 = vpack.c.b16 %v315, %v307
    %v404 = vpack.c.b16 %v316, %v308
    %v405 = vpack.c.b16 %v317, %v309
    %v406 = vpack.c.b16 %v318, %v310
    %v407 = vpack.c.b16 %v327, %v319
    %v408 = vpack.c.b16 %v328, %v320
    %v409 = vpack.c.b16 %v329, %v321
    %v410 = vpack.c.b16 %v330, %v322
    %v411 = vpack.c.b16 %v331, %v323
    %v412 = vpack.c.b16 %v332, %v324
    %v413 = vpack.c.b16 %v333, %v325
    %v414 = vpack.c.b16 %v334, %v326
    %v415 = vpack.c.b16 %v343, %v335
    %v416 = vpack.c.b16 %v344, %v336
    %v417 = vpack.c.b16 %v345, %v337
    %v418 = vpack.c.b16 %v346, %v338
    %v419 = vpack.c.b16 %v347, %v339
    %v420 = vpack.c.b16 %v348, %v340
    %v421 = vpack.c.b16 %v349, %v341
    %v422 = vpack.c.b16 %v350, %v342
    %v423 = vpack.c.b16 %v359, %v351
    %v424 = vpack.c.b16 %v360, %v352
    %v425 = vpack.c.b16 %v361, %v353
    %v426 = vpack.c.b16 %v362, %v354
    %v427 = vpack.c.b16 %v363, %v355
    %v428 = vpack.c.b16 %v364, %v356
    %v429 = vpack.c.b16 %v365, %v357
    %v430 = vpack.c.b16 %v366, %v358
    %495 = vmatprep.subr.bf16.mxu0 %v368
    %496 = vmatpush1.bf16.msra.mxu0 %v367
    %497 = vmatprep.subr.bf16.mxu0 %v376
    %498 = vmatpush1.bf16.msra.mxu0 %v375
    %499 = vmatprep.subr.bf16.mxu0 %v384
    %500 = vmatpush1.bf16.msra.mxu0 %v383
    %501 = vmatprep.subr.bf16.mxu0 %v392
    %502 = vmatpush1.bf16.msra.mxu0 %v391
    %503 = vmatprep.subr.bf16.mxu0 %v400
    %504 = vmatpush1.bf16.msra.mxu0 %v399
    %505 = vmatprep.subr.bf16.mxu0 %v408
    %506 = vmatpush1.bf16.msra.mxu0 %v407
    %507 = vmatprep.subr.bf16.mxu0 %v416
    %508 = vmatpush1.bf16.msra.mxu0 %v415
    %509 = vmatprep.subr.bf16.mxu0 %v424
    %510 = vmatpush1.bf16.msra.mxu0 %v423
    %511 = vmatprep.subr.bf16.mxu0 0
    %512 = vmatpush1.bf16.msra.mxu0 0
    %513 = vmatprep.subr.bf16.mxu0 0
    %514 = vmatpush1.bf16.msra.mxu0 0
    %515 = vmatprep.subr.bf16.mxu0 0
    %516 = vmatpush1.bf16.msra.mxu0 0
    %517 = vmatprep.subr.bf16.mxu0 0
    %518 = vmatpush1.bf16.msra.mxu0 0
    %519 = vmatprep.subr.bf16.mxu0 0
    %520 = vmatpush1.bf16.msra.mxu0 0
    %521 = vmatprep.subr.bf16.mxu0 0
    %522 = vmatpush1.bf16.msra.mxu0 0
    %523 = vmatprep.subr.bf16.mxu0 0
    %524 = vmatpush1.bf16.msra.mxu0 0
    %525 = vmatprep.subr.bf16.mxu0 0
    %526 = vmatpush1.bf16.msra.mxu0 0
    %527 = vmatprep.mubr.bf16.mxu0 0
    %528 = vmatmul.mubr.bf16.gmra.mrb[0].mxu0 %v68
    %v529 = vpop.f32.mrb[0].mxu0
    %v530 = vadd.f32 %v138, %v529
    %v531 = vpop.f32.mrb[0].mxu0
    %v532 = vadd.f32 %v142, %v531
    %v533 = vpop.f32.mrb[0].mxu0
    %v534 = vpop.f32.mrb[0].mxu0
    %535 = vdwg.mxu0
    %536 = vmatprep.subr.bf16.mxu0 %v370
    %537 = vmatpush1.bf16.msra.mxu0 %v369
    %538 = vmatprep.subr.bf16.mxu0 %v378
    %539 = vmatpush1.bf16.msra.mxu0 %v377
    %540 = vmatprep.subr.bf16.mxu0 %v386
    %541 = vmatpush1.bf16.msra.mxu0 %v385
    %542 = vmatprep.subr.bf16.mxu0 %v394
    %543 = vmatpush1.bf16.msra.mxu0 %v393
    %544 = vmatprep.subr.bf16.mxu0 %v402
    %545 = vmatpush1.bf16.msra.mxu0 %v401
    %546 = vmatprep.subr.bf16.mxu0 %v410
    %547 = vmatpush1.bf16.msra.mxu0 %v409
    %548 = vmatprep.subr.bf16.mxu0 %v418
    %549 = vmatpush1.bf16.msra.mxu0 %v417
    %550 = vmatprep.subr.bf16.mxu0 %v426
    %551 = vmatpush1.bf16.msra.mxu0 %v425
    %552 = vmatprep.subr.bf16.mxu0 0
    %553 = vmatpush1.bf16.msra.mxu0 0
    %554 = vmatprep.subr.bf16.mxu0 0
    %555 = vmatpush1.bf16.msra.mxu0 0
    %556 = vmatprep.subr.bf16.mxu0 0
    %557 = vmatpush1.bf16.msra.mxu0 0
    %558 = vmatprep.subr.bf16.mxu0 0
    %559 = vmatpush1.bf16.msra.mxu0 0
    %560 = vmatprep.subr.bf16.mxu0 0
    %561 = vmatpush1.bf16.msra.mxu0 0
    %562 = vmatprep.subr.bf16.mxu0 0
    %563 = vmatpush1.bf16.msra.mxu0 0
    %564 = vmatprep.subr.bf16.mxu0 0
    %565 = vmatpush1.bf16.msra.mxu0 0
    %566 = vmatprep.subr.bf16.mxu0 0
    %567 = vmatpush1.bf16.msra.mxu0 0
    %568 = vmatprep.mubr.bf16.mxu0 0
    %569 = vmatmul.mubr.bf16.gmra.mrb[0].mxu0 %v68
    %v570 = vpop.f32.mrb[0].mxu0
    %v571 = vadd.f32 %v146, %v570
    %v572 = vpop.f32.mrb[0].mxu0
    %v573 = vadd.f32 %v150, %v572
    %v574 = vpop.f32.mrb[0].mxu0
    %v575 = vpop.f32.mrb[0].mxu0
    %576 = vdwg.mxu0
    %577 = vmatprep.subr.bf16.mxu0 %v372
    %578 = vmatpush1.bf16.msra.mxu0 %v371
    %579 = vmatprep.subr.bf16.mxu0 %v380
    %580 = vmatpush1.bf16.msra.mxu0 %v379
    %581 = vmatprep.subr.bf16.mxu0 %v388
    %582 = vmatpush1.bf16.msra.mxu0 %v387
    %583 = vmatprep.subr.bf16.mxu0 %v396
    %584 = vmatpush1.bf16.msra.mxu0 %v395
    %585 = vmatprep.subr.bf16.mxu0 %v404
    %586 = vmatpush1.bf16.msra.mxu0 %v403
    %587 = vmatprep.subr.bf16.mxu0 %v412
    %588 = vmatpush1.bf16.msra.mxu0 %v411
    %589 = vmatprep.subr.bf16.mxu0 %v420
    %590 = vmatpush1.bf16.msra.mxu0 %v419
    %591 = vmatprep.subr.bf16.mxu0 %v428
    %592 = vmatpush1.bf16.msra.mxu0 %v427
    %593 = vmatprep.subr.bf16.mxu0 0
    %594 = vmatpush1.bf16.msra.mxu0 0
    %595 = vmatprep.subr.bf16.mxu0 0
    %596 = vmatpush1.bf16.msra.mxu0 0
    %597 = vmatprep.subr.bf16.mxu0 0
    %598 = vmatpush1.bf16.msra.mxu0 0
    %599 = vmatprep.subr.bf16.mxu0 0
    %600 = vmatpush1.bf16.msra.mxu0 0
    %601 = vmatprep.subr.bf16.mxu0 0
    %602 = vmatpush1.bf16.msra.mxu0 0
    %603 = vmatprep.subr.bf16.mxu0 0
    %604 = vmatpush1.bf16.msra.mxu0 0
    %605 = vmatprep.subr.bf16.mxu0 0
    %606 = vmatpush1.bf16.msra.mxu0 0
    %607 = vmatprep.subr.bf16.mxu0 0
    %608 = vmatpush1.bf16.msra.mxu0 0
    %609 = vmatprep.mubr.bf16.mxu0 0
    %610 = vmatmul.mubr.bf16.gmra.mrb[0].mxu0 %v68
    %v611 = vpop.f32.mrb[0].mxu0
    %v612 = vadd.f32 %v154, %v611
    %v613 = vpop.f32.mrb[0].mxu0
    %v614 = vadd.f32 %v158, %v613
    %v615 = vpop.f32.mrb[0].mxu0
    %v616 = vpop.f32.mrb[0].mxu0
    %617 = vdwg.mxu0
    %618 = vmatprep.subr.bf16.mxu0 %v374
    %619 = vmatpush1.bf16.msra.mxu0 %v373
    %620 = vmatprep.subr.bf16.mxu0 %v382
    %621 = vmatpush1.bf16.msra.mxu0 %v381
    %622 = vmatprep.subr.bf16.mxu0 %v390
    %623 = vmatpush1.bf16.msra.mxu0 %v389
    %624 = vmatprep.subr.bf16.mxu0 %v398
    %625 = vmatpush1.bf16.msra.mxu0 %v397
    %626 = vmatprep.subr.bf16.mxu0 %v406
    %627 = vmatpush1.bf16.msra.mxu0 %v405
    %628 = vmatprep.subr.bf16.mxu0 %v414
    %629 = vmatpush1.bf16.msra.mxu0 %v413
    %630 = vmatprep.subr.bf16.mxu0 %v422
    %631 = vmatpush1.bf16.msra.mxu0 %v421
    %632 = vmatprep.subr.bf16.mxu0 %v430
    %633 = vmatpush1.bf16.msra.mxu0 %v429
    %634 = vmatprep.subr.bf16.mxu0 0
    %635 = vmatpush1.bf16.msra.mxu0 0
    %636 = vmatprep.subr.bf16.mxu0 0
    %637 = vmatpush1.bf16.msra.mxu0 0
    %638 = vmatprep.subr.bf16.mxu0 0
    %639 = vmatpush1.bf16.msra.mxu0 0
    %640 = vmatprep.subr.bf16.mxu0 0
    %641 = vmatpush1.bf16.msra.mxu0 0
    %642 = vmatprep.subr.bf16.mxu0 0
    %643 = vmatpush1.bf16.msra.mxu0 0
    %644 = vmatprep.subr.bf16.mxu0 0
    %645 = vmatpush1.bf16.msra.mxu0 0
    %646 = vmatprep.subr.bf16.mxu0 0
    %647 = vmatpush1.bf16.msra.mxu0 0
    %648 = vmatprep.subr.bf16.mxu0 0
    %649 = vmatpush1.bf16.msra.mxu0 0
    %650 = vmatprep.mubr.bf16.mxu0 0
    %651 = vmatmul.mubr.bf16.gmra.mrb[0].mxu0 %v68
    %v652 = vpop.f32.mrb[0].mxu0
    %v653 = vadd.f32 %v162, %v652
    %v654 = vpop.f32.mrb[0].mxu0
    %v655 = vadd.f32 %v166, %v654
    %v656 = vpop.f32.mrb[0].mxu0
    %v657 = vpop.f32.mrb[0].mxu0
    %658 = vdwg.mxu0
    %v659 = vmax.f32 %v530, 0.0
    %v660 = vmax.f32 %v532, 0.0
    %v661 = vmax.f32 %v571, 0.0
    %v662 = vmax.f32 %v573, 0.0
    %v663 = vmax.f32 %v612, 0.0
    %v664 = vmax.f32 %v614, 0.0
    %v665 = vmax.f32 %v653, 0.0
    %v666 = vmax.f32 %v655, 0.0
    %v667 = vpack.c.bf16 %v659, %v659
    %v668 = vpack.c.bf16 %v660, %v660
    %v669 = vpack.c.bf16 %v661, %v661
    %v670 = vpack.c.bf16 %v662, %v662
    %v671 = vpack.c.bf16 %v663, %v663
    %v672 = vpack.c.bf16 %v664, %v664
    %v673 = vpack.c.bf16 %v665, %v665
    %v674 = vpack.c.bf16 %v666, %v666
    %v675 = vld [vmem:[#allocation7] sm:$0xff]
    %v676 = vld [vmem:[#allocation7 + $0x8] sm:$0xff]
    %v677 = vld [vmem:[#allocation7 + $0x10] sm:$0xff]
    %v678 = vld [vmem:[#allocation7 + $0x18] sm:$0xff]
    %v679 = vld [vmem:[#allocation7 + $0x20] sm:$0xff]
    %v680 = vld [vmem:[#allocation7 + $0x28] sm:$0xff]
    %v681 = vld [vmem:[#allocation7 + $0x30] sm:$0xff]
    %v682 = vld [vmem:[#allocation7 + $0x38] sm:$0xff]
    %v683 = vld [vmem:[#allocation7 + $0x40] sm:$0xff]
    %v684 = vld [vmem:[#allocation7 + $0x48] sm:$0xff]
    %v685 = vld [vmem:[#allocation7 + $0x50] sm:$0xff]
    %v686 = vld [vmem:[#allocation7 + $0x58] sm:$0xff]
    %v687 = vld [vmem:[#allocation7 + $0x60] sm:$0xff]
    %v688 = vld [vmem:[#allocation7 + $0x68] sm:$0xff]
    %v689 = vld [vmem:[#allocation7 + $0x70] sm:$0xff]
    %v690 = vld [vmem:[#allocation7 + $0x78] sm:$0xff]
    %v691 = vld [vmem:[#allocation7 + $0x80] sm:$0xff]
    %v692 = vld [vmem:[#allocation7 + $0x88] sm:$0xff]
    %v693 = vld [vmem:[#allocation7 + $0x90] sm:$0xff]
    %v694 = vld [vmem:[#allocation7 + $0x98] sm:$0xff]
    %v695 = vld [vmem:[#allocation7 + $0xa0] sm:$0xff]
    %v696 = vld [vmem:[#allocation7 + $0xa8] sm:$0xff]
    %v697 = vld [vmem:[#allocation7 + $0xb0] sm:$0xff]
    %v698 = vld [vmem:[#allocation7 + $0xb8] sm:$0xff]
    %v699 = vld [vmem:[#allocation7 + $0xc0] sm:$0xff]
    %v700 = vld [vmem:[#allocation7 + $0xc8] sm:$0xff]
    %v701 = vld [vmem:[#allocation7 + $0xd0] sm:$0xff]
    %v702 = vld [vmem:[#allocation7 + $0xd8] sm:$0xff]
    %v703 = vld [vmem:[#allocation7 + $0xe0] sm:$0xff]
    %v704 = vld [vmem:[#allocation7 + $0xe8] sm:$0xff]
    %v705 = vld [vmem:[#allocation7 + $0xf0] sm:$0xff]
    %v706 = vld [vmem:[#allocation7 + $0xf8] sm:$0xff]
    %v707 = vld [vmem:[#allocation7 + $0x100] sm:$0xff]
    %v708 = vld [vmem:[#allocation7 + $0x108] sm:$0xff]
    %v709 = vld [vmem:[#allocation7 + $0x110] sm:$0xff]
    %v710 = vld [vmem:[#allocation7 + $0x118] sm:$0xff]
    %v711 = vld [vmem:[#allocation7 + $0x120] sm:$0xff]
    %v712 = vld [vmem:[#allocation7 + $0x128] sm:$0xff]
    %v713 = vld [vmem:[#allocation7 + $0x130] sm:$0xff]
    %v714 = vld [vmem:[#allocation7 + $0x138] sm:$0xff]
    %v715 = vld [vmem:[#allocation7 + $0x140] sm:$0xff]
    %v716 = vld [vmem:[#allocation7 + $0x148] sm:$0xff]
    %v717 = vld [vmem:[#allocation7 + $0x150] sm:$0xff]
    %v718 = vld [vmem:[#allocation7 + $0x158] sm:$0xff]
    %v719 = vld [vmem:[#allocation7 + $0x160] sm:$0xff]
    %v720 = vld [vmem:[#allocation7 + $0x168] sm:$0xff]
    %v721 = vld [vmem:[#allocation7 + $0x170] sm:$0xff]
    %v722 = vld [vmem:[#allocation7 + $0x178] sm:$0xff]
    %v723 = vld [vmem:[#allocation7 + $0x180] sm:$0xff]
    %v724 = vld [vmem:[#allocation7 + $0x188] sm:$0xff]
    %v725 = vld [vmem:[#allocation7 + $0x190] sm:$0xff]
    %v726 = vld [vmem:[#allocation7 + $0x198] sm:$0xff]
    %v727 = vld [vmem:[#allocation7 + $0x1a0] sm:$0xff]
    %v728 = vld [vmem:[#allocation7 + $0x1a8] sm:$0xff]
    %v729 = vld [vmem:[#allocation7 + $0x1b0] sm:$0xff]
    %v730 = vld [vmem:[#allocation7 + $0x1b8] sm:$0xff]
    %v731 = vld [vmem:[#allocation7 + $0x1c0] sm:$0xff]
    %v732 = vld [vmem:[#allocation7 + $0x1c8] sm:$0xff]
    %v733 = vld [vmem:[#allocation7 + $0x1d0] sm:$0xff]
    %v734 = vld [vmem:[#allocation7 + $0x1d8] sm:$0xff]
    %v735 = vld [vmem:[#allocation7 + $0x1e0] sm:$0xff]
    %v736 = vld [vmem:[#allocation7 + $0x1e8] sm:$0xff]
    %v737 = vld [vmem:[#allocation7 + $0x1f0] sm:$0xff]
    %v738 = vld [vmem:[#allocation7 + $0x1f8] sm:$0xff]
    %v739 = vld [vmem:[#allocation7 + $0x200] sm:$0xff]
    %v740 = vld [vmem:[#allocation7 + $0x208] sm:$0xff]
    %v741 = vld [vmem:[#allocation7 + $0x210] sm:$0xff]
    %v742 = vld [vmem:[#allocation7 + $0x218] sm:$0xff]
    %v743 = vld [vmem:[#allocation7 + $0x220] sm:$0xff]
    %v744 = vld [vmem:[#allocation7 + $0x228] sm:$0xff]
    %v745 = vld [vmem:[#allocation7 + $0x230] sm:$0xff]
    %v746 = vld [vmem:[#allocation7 + $0x238] sm:$0xff]
    %v747 = vld [vmem:[#allocation7 + $0x240] sm:$0xff]
    %v748 = vld [vmem:[#allocation7 + $0x248] sm:$0xff]
    %v749 = vld [vmem:[#allocation7 + $0x250] sm:$0xff]
    %v750 = vld [vmem:[#allocation7 + $0x258] sm:$0xff]
    %v751 = vld [vmem:[#allocation7 + $0x260] sm:$0xff]
    %v752 = vld [vmem:[#allocation7 + $0x268] sm:$0xff]
    %v753 = vld [vmem:[#allocation7 + $0x270] sm:$0xff]
    %v754 = vld [vmem:[#allocation7 + $0x278] sm:$0xff]
    %v755 = vld [vmem:[#allocation7 + $0x280] sm:$0xff]
    %v756 = vld [vmem:[#allocation7 + $0x288] sm:$0xff]
    %v757 = vld [vmem:[#allocation7 + $0x290] sm:$0xff]
    %v758 = vld [vmem:[#allocation7 + $0x298] sm:$0xff]
    %v759 = vld [vmem:[#allocation7 + $0x2a0] sm:$0xff]
    %v760 = vld [vmem:[#allocation7 + $0x2a8] sm:$0xff]
    %v761 = vld [vmem:[#allocation7 + $0x2b0] sm:$0xff]
    %v762 = vld [vmem:[#allocation7 + $0x2b8] sm:$0xff]
    %v763 = vld [vmem:[#allocation7 + $0x2c0] sm:$0xff]
    %v764 = vld [vmem:[#allocation7 + $0x2c8] sm:$0xff]
    %v765 = vld [vmem:[#allocation7 + $0x2d0] sm:$0xff]
    %v766 = vld [vmem:[#allocation7 + $0x2d8] sm:$0xff]
    %v767 = vld [vmem:[#allocation7 + $0x2e0] sm:$0xff]
    %v768 = vld [vmem:[#allocation7 + $0x2e8] sm:$0xff]
    %v769 = vld [vmem:[#allocation7 + $0x2f0] sm:$0xff]
    %v770 = vld [vmem:[#allocation7 + $0x2f8] sm:$0xff]
    %v771 = vld [vmem:[#allocation7 + $0x300] sm:$0xff]
    %v772 = vld [vmem:[#allocation7 + $0x308] sm:$0xff]
    %v773 = vld [vmem:[#allocation7 + $0x310] sm:$0xff]
    %v774 = vld [vmem:[#allocation7 + $0x318] sm:$0xff]
    %v775 = vld [vmem:[#allocation7 + $0x320] sm:$0xff]
    %v776 = vld [vmem:[#allocation7 + $0x328] sm:$0xff]
    %v777 = vld [vmem:[#allocation7 + $0x330] sm:$0xff]
    %v778 = vld [vmem:[#allocation7 + $0x338] sm:$0xff]
    %v779 = vld [vmem:[#allocation7 + $0x340] sm:$0xff]
    %v780 = vld [vmem:[#allocation7 + $0x348] sm:$0xff]
    %v781 = vld [vmem:[#allocation7 + $0x350] sm:$0xff]
    %v782 = vld [vmem:[#allocation7 + $0x358] sm:$0xff]
    %v783 = vld [vmem:[#allocation7 + $0x360] sm:$0xff]
    %v784 = vld [vmem:[#allocation7 + $0x368] sm:$0xff]
    %v785 = vld [vmem:[#allocation7 + $0x370] sm:$0xff]
    %v786 = vld [vmem:[#allocation7 + $0x378] sm:$0xff]
    %v787 = vld [vmem:[#allocation7 + $0x380] sm:$0xff]
    %v788 = vld [vmem:[#allocation7 + $0x388] sm:$0xff]
    %v789 = vld [vmem:[#allocation7 + $0x390] sm:$0xff]
    %v790 = vld [vmem:[#allocation7 + $0x398] sm:$0xff]
    %v791 = vld [vmem:[#allocation7 + $0x3a0] sm:$0xff]
    %v792 = vld [vmem:[#allocation7 + $0x3a8] sm:$0xff]
    %v793 = vld [vmem:[#allocation7 + $0x3b0] sm:$0xff]
    %v794 = vld [vmem:[#allocation7 + $0x3b8] sm:$0xff]
    %v795 = vld [vmem:[#allocation7 + $0x3c0] sm:$0xff]
    %v796 = vld [vmem:[#allocation7 + $0x3c8] sm:$0xff]
    %v797 = vld [vmem:[#allocation7 + $0x3d0] sm:$0xff]
    %v798 = vld [vmem:[#allocation7 + $0x3d8] sm:$0xff]
    %v799 = vld [vmem:[#allocation7 + $0x3e0] sm:$0xff]
    %v800 = vld [vmem:[#allocation7 + $0x3e8] sm:$0xff]
    %v801 = vld [vmem:[#allocation7 + $0x3f0] sm:$0xff]
    %v802 = vld [vmem:[#allocation7 + $0x3f8] sm:$0xff]
    %v803 = vld [vmem:[%s4] sm:$0x3]
    %v805 = vlaneseq
    %v806 = vshrl.u32 %v805, 7
    %v807 = vsub.s32 0, %v806
    %v808 = vrot.slane %v803, %v807
    %v809 = vlaneseq
    %v810 = vshrl.u32 %v809, 7
    %v811 = vsub.s32 1, %v810
    %v812 = vrot.slane %v803, %v811
    %v943 = vunpack.c.l.b16 %v675
    %v944 = vunpack.c.h.b16 %v675
    %v945 = vunpack.c.l.b16 %v676
    %v946 = vunpack.c.h.b16 %v676
    %v947 = vunpack.c.l.b16 %v677
    %v948 = vunpack.c.h.b16 %v677
    %v949 = vunpack.c.l.b16 %v678
    %v950 = vunpack.c.h.b16 %v678
    %v951 = vunpack.c.l.b16 %v679
    %v952 = vunpack.c.h.b16 %v679
    %v953 = vunpack.c.l.b16 %v680
    %v954 = vunpack.c.h.b16 %v680
    %v955 = vunpack.c.l.b16 %v681
    %v956 = vunpack.c.h.b16 %v681
    %v957 = vunpack.c.l.b16 %v682
    %v958 = vunpack.c.h.b16 %v682
    %v959 = vunpack.c.l.b16 %v683
    %v960 = vunpack.c.h.b16 %v683
    %v961 = vunpack.c.l.b16 %v684
    %v962 = vunpack.c.h.b16 %v684
    %v963 = vunpack.c.l.b16 %v685
    %v964 = vunpack.c.h.b16 %v685
    %v965 = vunpack.c.l.b16 %v686
    %v966 = vunpack.c.h.b16 %v686
    %v967 = vunpack.c.l.b16 %v687
    %v968 = vunpack.c.h.b16 %v687
    %v969 = vunpack.c.l.b16 %v688
    %v970 = vunpack.c.h.b16 %v688
    %v971 = vunpack.c.l.b16 %v689
    %v972 = vunpack.c.h.b16 %v689
    %v973 = vunpack.c.l.b16 %v690
    %v974 = vunpack.c.h.b16 %v690
    %v975 = vunpack.c.l.b16 %v691
    %v976 = vunpack.c.h.b16 %v691
    %v977 = vunpack.c.l.b16 %v692
    %v978 = vunpack.c.h.b16 %v692
    %v979 = vunpack.c.l.b16 %v693
    %v980 = vunpack.c.h.b16 %v693
    %v981 = vunpack.c.l.b16 %v694
    %v982 = vunpack.c.h.b16 %v694
    %v983 = vunpack.c.l.b16 %v695
    %v984 = vunpack.c.h.b16 %v695
    %v985 = vunpack.c.l.b16 %v696
    %v986 = vunpack.c.h.b16 %v696
    %v987 = vunpack.c.l.b16 %v697
    %v988 = vunpack.c.h.b16 %v697
    %v989 = vunpack.c.l.b16 %v698
    %v990 = vunpack.c.h.b16 %v698
    %v991 = vunpack.c.l.b16 %v699
    %v992 = vunpack.c.h.b16 %v699
    %v993 = vunpack.c.l.b16 %v700
    %v994 = vunpack.c.h.b16 %v700
    %v995 = vunpack.c.l.b16 %v701
    %v996 = vunpack.c.h.b16 %v701
    %v997 = vunpack.c.l.b16 %v702
    %v998 = vunpack.c.h.b16 %v702
    %v999 = vunpack.c.l.b16 %v703
    %v1000 = vunpack.c.h.b16 %v703
    %v1001 = vunpack.c.l.b16 %v704
    %v1002 = vunpack.c.h.b16 %v704
    %v1003 = vunpack.c.l.b16 %v705
    %v1004 = vunpack.c.h.b16 %v705
    %v1005 = vunpack.c.l.b16 %v706
    %v1006 = vunpack.c.h.b16 %v706
    %v1007 = vunpack.c.l.b16 %v707
    %v1008 = vunpack.c.h.b16 %v707
    %v1009 = vunpack.c.l.b16 %v708
    %v1010 = vunpack.c.h.b16 %v708
    %v1011 = vunpack.c.l.b16 %v709
    %v1012 = vunpack.c.h.b16 %v709
    %v1013 = vunpack.c.l.b16 %v710
    %v1014 = vunpack.c.h.b16 %v710
    %v1015 = vunpack.c.l.b16 %v711
    %v1016 = vunpack.c.h.b16 %v711
    %v1017 = vunpack.c.l.b16 %v712
    %v1018 = vunpack.c.h.b16 %v712
    %v1019 = vunpack.c.l.b16 %v713
    %v1020 = vunpack.c.h.b16 %v713
    %v1021 = vunpack.c.l.b16 %v714
    %v1022 = vunpack.c.h.b16 %v714
    %v1023 = vunpack.c.l.b16 %v715
    %v1024 = vunpack.c.h.b16 %v715
    %v1025 = vunpack.c.l.b16 %v716
    %v1026 = vunpack.c.h.b16 %v716
    %v1027 = vunpack.c.l.b16 %v717
    %v1028 = vunpack.c.h.b16 %v717
    %v1029 = vunpack.c.l.b16 %v718
    %v1030 = vunpack.c.h.b16 %v718
    %v1031 = vunpack.c.l.b16 %v719
    %v1032 = vunpack.c.h.b16 %v719
    %v1033 = vunpack.c.l.b16 %v720
    %v1034 = vunpack.c.h.b16 %v720
    %v1035 = vunpack.c.l.b16 %v721
    %v1036 = vunpack.c.h.b16 %v721
    %v1037 = vunpack.c.l.b16 %v722
    %v1038 = vunpack.c.h.b16 %v722
    %v1039 = vunpack.c.l.b16 %v723
    %v1040 = vunpack.c.h.b16 %v723
    %v1041 = vunpack.c.l.b16 %v724
    %v1042 = vunpack.c.h.b16 %v724
    %v1043 = vunpack.c.l.b16 %v725
    %v1044 = vunpack.c.h.b16 %v725
    %v1045 = vunpack.c.l.b16 %v726
    %v1046 = vunpack.c.h.b16 %v726
    %v1047 = vunpack.c.l.b16 %v727
    %v1048 = vunpack.c.h.b16 %v727
    %v1049 = vunpack.c.l.b16 %v728
    %v1050 = vunpack.c.h.b16 %v728
    %v1051 = vunpack.c.l.b16 %v729
    %v1052 = vunpack.c.h.b16 %v729
    %v1053 = vunpack.c.l.b16 %v730
    %v1054 = vunpack.c.h.b16 %v730
    %v1055 = vunpack.c.l.b16 %v731
    %v1056 = vunpack.c.h.b16 %v731
    %v1057 = vunpack.c.l.b16 %v732
    %v1058 = vunpack.c.h.b16 %v732
    %v1059 = vunpack.c.l.b16 %v733
    %v1060 = vunpack.c.h.b16 %v733
    %v1061 = vunpack.c.l.b16 %v734
    %v1062 = vunpack.c.h.b16 %v734
    %v1063 = vunpack.c.l.b16 %v735
    %v1064 = vunpack.c.h.b16 %v735
    %v1065 = vunpack.c.l.b16 %v736
    %v1066 = vunpack.c.h.b16 %v736
    %v1067 = vunpack.c.l.b16 %v737
    %v1068 = vunpack.c.h.b16 %v737
    %v1069 = vunpack.c.l.b16 %v738
    %v1070 = vunpack.c.h.b16 %v738
    %v1071 = vunpack.c.l.b16 %v739
    %v1072 = vunpack.c.h.b16 %v739
    %v1073 = vunpack.c.l.b16 %v740
    %v1074 = vunpack.c.h.b16 %v740
    %v1075 = vunpack.c.l.b16 %v741
    %v1076 = vunpack.c.h.b16 %v741
    %v1077 = vunpack.c.l.b16 %v742
    %v1078 = vunpack.c.h.b16 %v742
    %v1079 = vunpack.c.l.b16 %v743
    %v1080 = vunpack.c.h.b16 %v743
    %v1081 = vunpack.c.l.b16 %v744
    %v1082 = vunpack.c.h.b16 %v744
    %v1083 = vunpack.c.l.b16 %v745
    %v1084 = vunpack.c.h.b16 %v745
    %v1085 = vunpack.c.l.b16 %v746
    %v1086 = vunpack.c.h.b16 %v746
    %v1087 = vunpack.c.l.b16 %v747
    %v1088 = vunpack.c.h.b16 %v747
    %v1089 = vunpack.c.l.b16 %v748
    %v1090 = vunpack.c.h.b16 %v748
    %v1091 = vunpack.c.l.b16 %v749
    %v1092 = vunpack.c.h.b16 %v749
    %v1093 = vunpack.c.l.b16 %v750
    %v1094 = vunpack.c.h.b16 %v750
    %v1095 = vunpack.c.l.b16 %v751
    %v1096 = vunpack.c.h.b16 %v751
    %v1097 = vunpack.c.l.b16 %v752
    %v1098 = vunpack.c.h.b16 %v752
    %v1099 = vunpack.c.l.b16 %v753
    %v1100 = vunpack.c.h.b16 %v753
    %v1101 = vunpack.c.l.b16 %v754
    %v1102 = vunpack.c.h.b16 %v754
    %v1103 = vunpack.c.l.b16 %v755
    %v1104 = vunpack.c.h.b16 %v755
    %v1105 = vunpack.c.l.b16 %v756
    %v1106 = vunpack.c.h.b16 %v756
    %v1107 = vunpack.c.l.b16 %v757
    %v1108 = vunpack.c.h.b16 %v757
    %v1109 = vunpack.c.l.b16 %v758
    %v1110 = vunpack.c.h.b16 %v758
    %v1111 = vunpack.c.l.b16 %v759
    %v1112 = vunpack.c.h.b16 %v759
    %v1113 = vunpack.c.l.b16 %v760
    %v1114 = vunpack.c.h.b16 %v760
    %v1115 = vunpack.c.l.b16 %v761
    %v1116 = vunpack.c.h.b16 %v761
    %v1117 = vunpack.c.l.b16 %v762
    %v1118 = vunpack.c.h.b16 %v762
    %v1119 = vunpack.c.l.b16 %v763
    %v1120 = vunpack.c.h.b16 %v763
    %v1121 = vunpack.c.l.b16 %v764
    %v1122 = vunpack.c.h.b16 %v764
    %v1123 = vunpack.c.l.b16 %v765
    %v1124 = vunpack.c.h.b16 %v765
    %v1125 = vunpack.c.l.b16 %v766
    %v1126 = vunpack.c.h.b16 %v766
    %v1127 = vunpack.c.l.b16 %v767
    %v1128 = vunpack.c.h.b16 %v767
    %v1129 = vunpack.c.l.b16 %v768
    %v1130 = vunpack.c.h.b16 %v768
    %v1131 = vunpack.c.l.b16 %v769
    %v1132 = vunpack.c.h.b16 %v769
    %v1133 = vunpack.c.l.b16 %v770
    %v1134 = vunpack.c.h.b16 %v770
    %v1135 = vunpack.c.l.b16 %v771
    %v1136 = vunpack.c.h.b16 %v771
    %v1137 = vunpack.c.l.b16 %v772
    %v1138 = vunpack.c.h.b16 %v772
    %v1139 = vunpack.c.l.b16 %v773
    %v1140 = vunpack.c.h.b16 %v773
    %v1141 = vunpack.c.l.b16 %v774
    %v1142 = vunpack.c.h.b16 %v774
    %v1143 = vunpack.c.l.b16 %v775
    %v1144 = vunpack.c.h.b16 %v775
    %v1145 = vunpack.c.l.b16 %v776
    %v1146 = vunpack.c.h.b16 %v776
    %v1147 = vunpack.c.l.b16 %v777
    %v1148 = vunpack.c.h.b16 %v777
    %v1149 = vunpack.c.l.b16 %v778
    %v1150 = vunpack.c.h.b16 %v778
    %v1151 = vunpack.c.l.b16 %v779
    %v1152 = vunpack.c.h.b16 %v779
    %v1153 = vunpack.c.l.b16 %v780
    %v1154 = vunpack.c.h.b16 %v780
    %v1155 = vunpack.c.l.b16 %v781
    %v1156 = vunpack.c.h.b16 %v781
    %v1157 = vunpack.c.l.b16 %v782
    %v1158 = vunpack.c.h.b16 %v782
    %v1159 = vunpack.c.l.b16 %v783
    %v1160 = vunpack.c.h.b16 %v783
    %v1161 = vunpack.c.l.b16 %v784
    %v1162 = vunpack.c.h.b16 %v784
    %v1163 = vunpack.c.l.b16 %v785
    %v1164 = vunpack.c.h.b16 %v785
    %v1165 = vunpack.c.l.b16 %v786
    %v1166 = vunpack.c.h.b16 %v786
    %v1167 = vunpack.c.l.b16 %v787
    %v1168 = vunpack.c.h.b16 %v787
    %v1169 = vunpack.c.l.b16 %v788
    %v1170 = vunpack.c.h.b16 %v788
    %v1171 = vunpack.c.l.b16 %v789
    %v1172 = vunpack.c.h.b16 %v789
    %v1173 = vunpack.c.l.b16 %v790
    %v1174 = vunpack.c.h.b16 %v790
    %v1175 = vunpack.c.l.b16 %v791
    %v1176 = vunpack.c.h.b16 %v791
    %v1177 = vunpack.c.l.b16 %v792
    %v1178 = vunpack.c.h.b16 %v792
    %v1179 = vunpack.c.l.b16 %v793
    %v1180 = vunpack.c.h.b16 %v793
    %v1181 = vunpack.c.l.b16 %v794
    %v1182 = vunpack.c.h.b16 %v794
    %v1183 = vunpack.c.l.b16 %v795
    %v1184 = vunpack.c.h.b16 %v795
    %v1185 = vunpack.c.l.b16 %v796
    %v1186 = vunpack.c.h.b16 %v796
    %v1187 = vunpack.c.l.b16 %v797
    %v1188 = vunpack.c.h.b16 %v797
    %v1189 = vunpack.c.l.b16 %v798
    %v1190 = vunpack.c.h.b16 %v798
    %v1191 = vunpack.c.l.b16 %v799
    %v1192 = vunpack.c.h.b16 %v799
    %v1193 = vunpack.c.l.b16 %v800
    %v1194 = vunpack.c.h.b16 %v800
    %v1195 = vunpack.c.l.b16 %v801
    %v1196 = vunpack.c.h.b16 %v801
    %v1197 = vunpack.c.l.b16 %v802
    %v1198 = vunpack.c.h.b16 %v802
    %v1199 = vpack.c.b16 %v945, %v943
    %v1200 = vpack.c.b16 %v946, %v944
    %v1201 = vpack.c.b16 %v949, %v947
    %v1202 = vpack.c.b16 %v950, %v948
    %v1203 = vpack.c.b16 %v953, %v951
    %v1204 = vpack.c.b16 %v954, %v952
    %v1205 = vpack.c.b16 %v957, %v955
    %v1206 = vpack.c.b16 %v958, %v956
    %v1207 = vpack.c.b16 %v961, %v959
    %v1208 = vpack.c.b16 %v962, %v960
    %v1209 = vpack.c.b16 %v965, %v963
    %v1210 = vpack.c.b16 %v966, %v964
    %v1211 = vpack.c.b16 %v969, %v967
    %v1212 = vpack.c.b16 %v970, %v968
    %v1213 = vpack.c.b16 %v973, %v971
    %v1214 = vpack.c.b16 %v974, %v972
    %v1215 = vpack.c.b16 %v977, %v975
    %v1216 = vpack.c.b16 %v978, %v976
    %v1217 = vpack.c.b16 %v981, %v979
    %v1218 = vpack.c.b16 %v982, %v980
    %v1219 = vpack.c.b16 %v985, %v983
    %v1220 = vpack.c.b16 %v986, %v984
    %v1221 = vpack.c.b16 %v989, %v987
    %v1222 = vpack.c.b16 %v990, %v988
    %v1223 = vpack.c.b16 %v993, %v991
    %v1224 = vpack.c.b16 %v994, %v992
    %v1225 = vpack.c.b16 %v997, %v995
    %v1226 = vpack.c.b16 %v998, %v996
    %v1227 = vpack.c.b16 %v1001, %v999
    %v1228 = vpack.c.b16 %v1002, %v1000
    %v1229 = vpack.c.b16 %v1005, %v1003
    %v1230 = vpack.c.b16 %v1006, %v1004
    %v1231 = vpack.c.b16 %v1009, %v1007
    %v1232 = vpack.c.b16 %v1010, %v1008
    %v1233 = vpack.c.b16 %v1013, %v1011
    %v1234 = vpack.c.b16 %v1014, %v1012
    %v1235 = vpack.c.b16 %v1017, %v1015
    %v1236 = vpack.c.b16 %v1018, %v1016
    %v1237 = vpack.c.b16 %v1021, %v1019
    %v1238 = vpack.c.b16 %v1022, %v1020
    %v1239 = vpack.c.b16 %v1025, %v1023
    %v1240 = vpack.c.b16 %v1026, %v1024
    %v1241 = vpack.c.b16 %v1029, %v1027
    %v1242 = vpack.c.b16 %v1030, %v1028
    %v1243 = vpack.c.b16 %v1033, %v1031
    %v1244 = vpack.c.b16 %v1034, %v1032
    %v1245 = vpack.c.b16 %v1037, %v1035
    %v1246 = vpack.c.b16 %v1038, %v1036
    %v1247 = vpack.c.b16 %v1041, %v1039
    %v1248 = vpack.c.b16 %v1042, %v1040
    %v1249 = vpack.c.b16 %v1045, %v1043
    %v1250 = vpack.c.b16 %v1046, %v1044
    %v1251 = vpack.c.b16 %v1049, %v1047
    %v1252 = vpack.c.b16 %v1050, %v1048
    %v1253 = vpack.c.b16 %v1053, %v1051
    %v1254 = vpack.c.b16 %v1054, %v1052
    %v1255 = vpack.c.b16 %v1057, %v1055
    %v1256 = vpack.c.b16 %v1058, %v1056
    %v1257 = vpack.c.b16 %v1061, %v1059
    %v1258 = vpack.c.b16 %v1062, %v1060
    %v1259 = vpack.c.b16 %v1065, %v1063
    %v1260 = vpack.c.b16 %v1066, %v1064
    %v1261 = vpack.c.b16 %v1069, %v1067
    %v1262 = vpack.c.b16 %v1070, %v1068
    %v1263 = vpack.c.b16 %v1073, %v1071
    %v1264 = vpack.c.b16 %v1074, %v1072
    %v1265 = vpack.c.b16 %v1077, %v1075
    %v1266 = vpack.c.b16 %v1078, %v1076
    %v1267 = vpack.c.b16 %v1081, %v1079
    %v1268 = vpack.c.b16 %v1082, %v1080
    %v1269 = vpack.c.b16 %v1085, %v1083
    %v1270 = vpack.c.b16 %v1086, %v1084
    %v1271 = vpack.c.b16 %v1089, %v1087
    %v1272 = vpack.c.b16 %v1090, %v1088
    %v1273 = vpack.c.b16 %v1093, %v1091
    %v1274 = vpack.c.b16 %v1094, %v1092
    %v1275 = vpack.c.b16 %v1097, %v1095
    %v1276 = vpack.c.b16 %v1098, %v1096
    %v1277 = vpack.c.b16 %v1101, %v1099
    %v1278 = vpack.c.b16 %v1102, %v1100
    %v1279 = vpack.c.b16 %v1105, %v1103
    %v1280 = vpack.c.b16 %v1106, %v1104
    %v1281 = vpack.c.b16 %v1109, %v1107
    %v1282 = vpack.c.b16 %v1110, %v1108
    %v1283 = vpack.c.b16 %v1113, %v1111
    %v1284 = vpack.c.b16 %v1114, %v1112
    %v1285 = vpack.c.b16 %v1117, %v1115
    %v1286 = vpack.c.b16 %v1118, %v1116
    %v1287 = vpack.c.b16 %v1121, %v1119
    %v1288 = vpack.c.b16 %v1122, %v1120
    %v1289 = vpack.c.b16 %v1125, %v1123
    %v1290 = vpack.c.b16 %v1126, %v1124
    %v1291 = vpack.c.b16 %v1129, %v1127
    %v1292 = vpack.c.b16 %v1130, %v1128
    %v1293 = vpack.c.b16 %v1133, %v1131
    %v1294 = vpack.c.b16 %v1134, %v1132
    %v1295 = vpack.c.b16 %v1137, %v1135
    %v1296 = vpack.c.b16 %v1138, %v1136
    %v1297 = vpack.c.b16 %v1141, %v1139
    %v1298 = vpack.c.b16 %v1142, %v1140
    %v1299 = vpack.c.b16 %v1145, %v1143
    %v1300 = vpack.c.b16 %v1146, %v1144
    %v1301 = vpack.c.b16 %v1149, %v1147
    %v1302 = vpack.c.b16 %v1150, %v1148
    %v1303 = vpack.c.b16 %v1153, %v1151
    %v1304 = vpack.c.b16 %v1154, %v1152
    %v1305 = vpack.c.b16 %v1157, %v1155
    %v1306 = vpack.c.b16 %v1158, %v1156
    %v1307 = vpack.c.b16 %v1161, %v1159
    %v1308 = vpack.c.b16 %v1162, %v1160
    %v1309 = vpack.c.b16 %v1165, %v1163
    %v1310 = vpack.c.b16 %v1166, %v1164
    %v1311 = vpack.c.b16 %v1169, %v1167
    %v1312 = vpack.c.b16 %v1170, %v1168
    %v1313 = vpack.c.b16 %v1173, %v1171
    %v1314 = vpack.c.b16 %v1174, %v1172
    %v1315 = vpack.c.b16 %v1177, %v1175
    %v1316 = vpack.c.b16 %v1178, %v1176
    %v1317 = vpack.c.b16 %v1181, %v1179
    %v1318 = vpack.c.b16 %v1182, %v1180
    %v1319 = vpack.c.b16 %v1185, %v1183
    %v1320 = vpack.c.b16 %v1186, %v1184
    %v1321 = vpack.c.b16 %v1189, %v1187
    %v1322 = vpack.c.b16 %v1190, %v1188
    %v1323 = vpack.c.b16 %v1193, %v1191
    %v1324 = vpack.c.b16 %v1194, %v1192
    %v1325 = vpack.c.b16 %v1197, %v1195
    %v1326 = vpack.c.b16 %v1198, %v1196
    %1455 = vmatprep.subr.bf16.mxu0 %v1200
    %1456 = vmatpush1.bf16.msra.mxu0 %v1199
    %1457 = vmatprep.subr.bf16.mxu0 %v1202
    %1458 = vmatpush1.bf16.msra.mxu0 %v1201
    %1459 = vmatprep.subr.bf16.mxu0 %v1204
    %1460 = vmatpush1.bf16.msra.mxu0 %v1203
    %1461 = vmatprep.subr.bf16.mxu0 %v1206
    %1462 = vmatpush1.bf16.msra.mxu0 %v1205
    %1463 = vmatprep.subr.bf16.mxu0 %v1208
    %1464 = vmatpush1.bf16.msra.mxu0 %v1207
    %1465 = vmatprep.subr.bf16.mxu0 %v1210
    %1466 = vmatpush1.bf16.msra.mxu0 %v1209
    %1467 = vmatprep.subr.bf16.mxu0 %v1212
    %1468 = vmatpush1.bf16.msra.mxu0 %v1211
    %1469 = vmatprep.subr.bf16.mxu0 %v1214
    %1470 = vmatpush1.bf16.msra.mxu0 %v1213
    %1471 = vmatprep.subr.bf16.mxu0 %v1216
    %1472 = vmatpush1.bf16.msra.mxu0 %v1215
    %1473 = vmatprep.subr.bf16.mxu0 %v1218
    %1474 = vmatpush1.bf16.msra.mxu0 %v1217
    %1475 = vmatprep.subr.bf16.mxu0 %v1220
    %1476 = vmatpush1.bf16.msra.mxu0 %v1219
    %1477 = vmatprep.subr.bf16.mxu0 %v1222
    %1478 = vmatpush1.bf16.msra.mxu0 %v1221
    %1479 = vmatprep.subr.bf16.mxu0 %v1224
    %1480 = vmatpush1.bf16.msra.mxu0 %v1223
    %1481 = vmatprep.subr.bf16.mxu0 %v1226
    %1482 = vmatpush1.bf16.msra.mxu0 %v1225
    %1483 = vmatprep.subr.bf16.mxu0 %v1228
    %1484 = vmatpush1.bf16.msra.mxu0 %v1227
    %1485 = vmatprep.subr.bf16.mxu0 %v1230
    %1486 = vmatpush1.bf16.msra.mxu0 %v1229
    %1487 = vmatprep.mubr.bf16.mxu0 %v668
    %1488 = vmatmul.mubr.bf16.gmra.mrb[0].mxu0 %v667
    %v1489 = vpop.f32.mrb[0].mxu0
    %v1490 = vadd.f32 %v808, %v1489
    %v1491 = vpop.f32.mrb[0].mxu0
    %v1492 = vadd.f32 %v812, %v1491
    %v1493 = vpop.f32.mrb[0].mxu0
    %v1494 = vpop.f32.mrb[0].mxu0
    %1495 = vdwg.mxu0
    %1496 = vmatprep.subr.bf16.mxu0 %v1232
    %1497 = vmatpush1.bf16.msra.mxu0 %v1231
    %1498 = vmatprep.subr.bf16.mxu0 %v1234
    %1499 = vmatpush1.bf16.msra.mxu0 %v1233
    %1500 = vmatprep.subr.bf16.mxu0 %v1236
    %1501 = vmatpush1.bf16.msra.mxu0 %v1235
    %1502 = vmatprep.subr.bf16.mxu0 %v1238
    %1503 = vmatpush1.bf16.msra.mxu0 %v1237
    %1504 = vmatprep.subr.bf16.mxu0 %v1240
    %1505 = vmatpush1.bf16.msra.mxu0 %v1239
    %1506 = vmatprep.subr.bf16.mxu0 %v1242
    %1507 = vmatpush1.bf16.msra.mxu0 %v1241
    %1508 = vmatprep.subr.bf16.mxu0 %v1244
    %1509 = vmatpush1.bf16.msra.mxu0 %v1243
    %1510 = vmatprep.subr.bf16.mxu0 %v1246
    %1511 = vmatpush1.bf16.msra.mxu0 %v1245
    %1512 = vmatprep.subr.bf16.mxu0 %v1248
    %1513 = vmatpush1.bf16.msra.mxu0 %v1247
    %1514 = vmatprep.subr.bf16.mxu0 %v1250
    %1515 = vmatpush1.bf16.msra.mxu0 %v1249
    %1516 = vmatprep.subr.bf16.mxu0 %v1252
    %1517 = vmatpush1.bf16.msra.mxu0 %v1251
    %1518 = vmatprep.subr.bf16.mxu0 %v1254
    %1519 = vmatpush1.bf16.msra.mxu0 %v1253
    %1520 = vmatprep.subr.bf16.mxu0 %v1256
    %1521 = vmatpush1.bf16.msra.mxu0 %v1255
    %1522 = vmatprep.subr.bf16.mxu0 %v1258
    %1523 = vmatpush1.bf16.msra.mxu0 %v1257
    %1524 = vmatprep.subr.bf16.mxu0 %v1260
    %1525 = vmatpush1.bf16.msra.mxu0 %v1259
    %1526 = vmatprep.subr.bf16.mxu0 %v1262
    %1527 = vmatpush1.bf16.msra.mxu0 %v1261
    %1528 = vmatprep.mubr.bf16.mxu0 %v670
    %1529 = vmatmul.mubr.bf16.gmra.mrb[0].mxu0 %v669
    %v1530 = vpop.f32.mrb[0].mxu0
    %v1531 = vadd.f32 %v1490, %v1530
    %v1532 = vpop.f32.mrb[0].mxu0
    %v1533 = vadd.f32 %v1492, %v1532
    %v1534 = vpop.f32.mrb[0].mxu0
    %v1535 = vpop.f32.mrb[0].mxu0
    %1536 = vdwg.mxu0
    %1537 = vmatprep.subr.bf16.mxu0 %v1264
    %1538 = vmatpush1.bf16.msra.mxu0 %v1263
    %1539 = vmatprep.subr.bf16.mxu0 %v1266
    %1540 = vmatpush1.bf16.msra.mxu0 %v1265
    %1541 = vmatprep.subr.bf16.mxu0 %v1268
    %1542 = vmatpush1.bf16.msra.mxu0 %v1267
    %1543 = vmatprep.subr.bf16.mxu0 %v1270
    %1544 = vmatpush1.bf16.msra.mxu0 %v1269
    %1545 = vmatprep.subr.bf16.mxu0 %v1272
    %1546 = vmatpush1.bf16.msra.mxu0 %v1271
    %1547 = vmatprep.subr.bf16.mxu0 %v1274
    %1548 = vmatpush1.bf16.msra.mxu0 %v1273
    %1549 = vmatprep.subr.bf16.mxu0 %v1276
    %1550 = vmatpush1.bf16.msra.mxu0 %v1275
    %1551 = vmatprep.subr.bf16.mxu0 %v1278
    %1552 = vmatpush1.bf16.msra.mxu0 %v1277
    %1553 = vmatprep.subr.bf16.mxu0 %v1280
    %1554 = vmatpush1.bf16.msra.mxu0 %v1279
    %1555 = vmatprep.subr.bf16.mxu0 %v1282
    %1556 = vmatpush1.bf16.msra.mxu0 %v1281
    %1557 = vmatprep.subr.bf16.mxu0 %v1284
    %1558 = vmatpush1.bf16.msra.mxu0 %v1283
    %1559 = vmatprep.subr.bf16.mxu0 %v1286
    %1560 = vmatpush1.bf16.msra.mxu0 %v1285
    %1561 = vmatprep.subr.bf16.mxu0 %v1288
    %1562 = vmatpush1.bf16.msra.mxu0 %v1287
    %1563 = vmatprep.subr.bf16.mxu0 %v1290
    %1564 = vmatpush1.bf16.msra.mxu0 %v1289
    %1565 = vmatprep.subr.bf16.mxu0 %v1292
    %1566 = vmatpush1.bf16.msra.mxu0 %v1291
    %1567 = vmatprep.subr.bf16.mxu0 %v1294
    %1568 = vmatpush1.bf16.msra.mxu0 %v1293
    %1569 = vmatprep.mubr.bf16.mxu0 %v672
    %1570 = vmatmul.mubr.bf16.gmra.mrb[0].mxu0 %v671
    %v1571 = vpop.f32.mrb[0].mxu0
    %v1572 = vadd.f32 %v1531, %v1571
    %v1573 = vpop.f32.mrb[0].mxu0
    %v1574 = vadd.f32 %v1533, %v1573
    %v1575 = vpop.f32.mrb[0].mxu0
    %v1576 = vpop.f32.mrb[0].mxu0
    %1577 = vdwg.mxu0
    %1578 = vmatprep.subr.bf16.mxu0 %v1296
    %1579 = vmatpush1.bf16.msra.mxu0 %v1295
    %1580 = vmatprep.subr.bf16.mxu0 %v1298
    %1581 = vmatpush1.bf16.msra.mxu0 %v1297
    %1582 = vmatprep.subr.bf16.mxu0 %v1300
    %1583 = vmatpush1.bf16.msra.mxu0 %v1299
    %1584 = vmatprep.subr.bf16.mxu0 %v1302
    %1585 = vmatpush1.bf16.msra.mxu0 %v1301
    %1586 = vmatprep.subr.bf16.mxu0 %v1304
    %1587 = vmatpush1.bf16.msra.mxu0 %v1303
    %1588 = vmatprep.subr.bf16.mxu0 %v1306
    %1589 = vmatpush1.bf16.msra.mxu0 %v1305
    %1590 = vmatprep.subr.bf16.mxu0 %v1308
    %1591 = vmatpush1.bf16.msra.mxu0 %v1307
    %1592 = vmatprep.subr.bf16.mxu0 %v1310
    %1593 = vmatpush1.bf16.msra.mxu0 %v1309
    %1594 = vmatprep.subr.bf16.mxu0 %v1312
    %1595 = vmatpush1.bf16.msra.mxu0 %v1311
    %1596 = vmatprep.subr.bf16.mxu0 %v1314
    %1597 = vmatpush1.bf16.msra.mxu0 %v1313
    %1598 = vmatprep.subr.bf16.mxu0 %v1316
    %1599 = vmatpush1.bf16.msra.mxu0 %v1315
    %1600 = vmatprep.subr.bf16.mxu0 %v1318
    %1601 = vmatpush1.bf16.msra.mxu0 %v1317
    %1602 = vmatprep.subr.bf16.mxu0 %v1320
    %1603 = vmatpush1.bf16.msra.mxu0 %v1319
    %1604 = vmatprep.subr.bf16.mxu0 %v1322
    %1605 = vmatpush1.bf16.msra.mxu0 %v1321
    %1606 = vmatprep.subr.bf16.mxu0 %v1324
    %1607 = vmatpush1.bf16.msra.mxu0 %v1323
    %1608 = vmatprep.subr.bf16.mxu0 %v1326
    %1609 = vmatpush1.bf16.msra.mxu0 %v1325
    %1610 = vmatprep.mubr.bf16.mxu0 %v674
    %1611 = vmatmul.mubr.bf16.gmra.mrb[0].mxu0 %v673
    %v1612 = vpop.f32.mrb[0].mxu0
    %v1613 = vadd.f32 %v1572, %v1612
    %v1614 = vpop.f32.mrb[0].mxu0
    %v1615 = vadd.f32 %v1574, %v1614
    %v1616 = vpop.f32.mrb[0].mxu0
    %v1617 = vpop.f32.mrb[0].mxu0
    %1618 = vdwg.mxu0
    %v1619 = vmax.f32 %v1613, 0.0
    %v1620 = vmax.f32 %v1615, 0.0
    %v1621 = vld [vmem:[%s5] sm:$0x3]
    %v1623 = vlaneseq
    %v1624 = vshrl.u32 %v1623, 7
    %v1625 = vsub.s32 0, %v1624
    %v1626 = vrot.slane %v1621, %v1625
    %v1627 = vlaneseq
    %v1628 = vshrl.u32 %v1627, 7
    %v1629 = vsub.s32 1, %v1628
    %v1630 = vrot.slane %v1621, %v1629
    %v1633 = vmul.f32 %v1619, %v1626
    %v1634 = vmul.f32 %v1620, %v1630
    %v1635 = vadd.f32 %v1633, %v1634
    %1636 = vadd.xlane.f32.xlu0 %v1635
    %v1637 = vpop.xlane.xlu0 %1636
    %v1638 = vld [vmem:[#allocation2] sm:$0x1]
    %v1640 = vlaneseq
    %v1641 = vshrl.u32 %v1640, 7
    %v1642 = vsub.s32 0, %v1641
    %v1643 = vrot.slane %v1638, %v1642
    %v1645 = vadd.f32 %v1637, %v1643
    %v1646 = vxor.u32 %v1645, 2147483648
    %v1647 = vmul.f32 %v1646, 1.442695
    %v1648 = vpow.pop %v1647
    %v1649 = vadd.f32 %v1648, 1.0
    %v1650 = vrcp.pop %v1649
    %v1651 = vmul.f32 1.0, %v1650
    %vm1652 = vcmask 7168
    %1653 = vst.msk [vmem:[%s7] sm:$0xff] %vm1652, %v1651
    // Predicated region
    $region42: #{tpu_custom_call.1} parent=1 // pred_check
      _
    $region43: #{tpu_custom_call.1} parent=1 // pred_check_branch
      %1655 = sbr.rel (0) target = $region45
    $region44: #{tpu_custom_call.1} parent=1 // pred_region
      _
    $region45: #{tpu_custom_call.1} parent=1 // pred_fallthru
      _
    // Predicated region
    $region46: #{tpu_custom_call.1} parent=1 // pred_check
      _
    $region47: #{tpu_custom_call.1} parent=1 // pred_check_branch
      %1657 = sbr.rel (0) target = $region49
    $region48: #{tpu_custom_call.1} parent=1 // pred_region
      _
    $region49: #{tpu_custom_call.1} parent=1 // pred_fallthru
      _
    %1658 = vsyncpa [#allocation4], 1
    %1659 = vsyncpa [#allocation6], 1

</llo_original>
